<compile_context>
chip_gen: v7x
topology: tpu7x:2x2x1
jax: 0.10.0
libtpu: 0.0.40
codegen_flags: <defaults>
</compile_context>

<pallas_src>
import functools

import numpy as np
import jax
import jax.numpy as jnp
from jax import lax
from jax.experimental import pallas as pl
from jax.experimental.pallas import tpu as pltpu


# Total footprint target for all (double-buffered) blocks of one kernel call.
_VMEM_BUDGET_BYTES = 24 * 1024 * 1024
# Scoped VMEM limit: within physical VMEM on every generation
# (v5e/v6e: 128 MiB, v7x: 64 MiB) and above the 16/32 MiB scoped defaults.
_VMEM_LIMIT_BYTES = 32 * 1024 * 1024


def _round_down(x, m):
    return (x // m) * m


# ---------------------------------------------------------------------------
# Kernel bodies
# ---------------------------------------------------------------------------

def _softmax_block(x, axis):
    """Numerically stable softmax over `axis` of a VMEM block (f32 compute)."""
    x = x.astype(jnp.float32)
    m = jnp.max(x, axis=axis, keepdims=True)
    e = jnp.exp(x - m)
    s = jnp.sum(e, axis=axis, keepdims=True)
    # exact reciprocal; approx=True risks the 1e-5 tolerance
    return e * pl.reciprocal(s, approx=False)


def _real_softmax_kernel(x_ref, o_ref, *, axis):
    o_ref[...] = _softmax_block(x_ref[...], axis).astype(o_ref.dtype)


def _complex_softmax_kernel(xr_ref, xi_ref, or_ref, oi_ref, *, axis):
    or_ref[...] = _softmax_block(xr_ref[...], axis).astype(or_ref.dtype)
    oi_ref[...] = _softmax_block(xi_ref[...], axis).astype(oi_ref.dtype)


# ---------------------------------------------------------------------------
# Tile selection (VMEM-budget driven)
# ---------------------------------------------------------------------------

def _choose_sublane_tiles(outer, d, inner, bytes_per_elem_all_arrays):
    """Block = (tile_o, D, tile_i); softmax axis D on sublanes, inner on lanes."""
    budget = _VMEM_BUDGET_BYTES // 2                 # blocks are double-buffered
    per_col = d * bytes_per_elem_all_arrays          # one lane column, all in+out
    lanes_budget = max(128, _round_down(budget // max(per_col, 1), 128))
    tile_i = inner if inner <= lanes_budget else lanes_budget
    step = per_col * tile_i
    tile_o = int(max(1, min(outer, budget // max(step, 1))))
    return tile_o, tile_i


def _choose_lane_tile(rows, d, bytes_per_elem_all_arrays):
    """Block = (tile_r, D); softmax axis D on lanes."""
    budget = _VMEM_BUDGET_BYTES // 2
    per_row = d * bytes_per_elem_all_arrays
    rows_budget = max(8, _round_down(budget // max(per_row, 1), 8))
    if rows <= 8:
        return rows
    return int(min(rows_budget, _round_down(rows, 8)))


# ---------------------------------------------------------------------------
# pallas_call runners
# ---------------------------------------------------------------------------

def _run_softmax_sublane(planes, out_dtypes):
    """planes: 1 (real) or 2 (real, imag) arrays of shape (outer, D, inner);
    softmax over axis 1 (the sublane axis of the block)."""
    outer, d, inner = planes[0].shape
    item_sum = (sum(np.dtype(p.dtype).itemsize for p in planes)
                + sum(np.dtype(t).itemsize for t in out_dtypes))
    tile_o, tile_i = _choose_sublane_tiles(outer, d, inner, item_sum)
    # TODO(synk): for very large D (block > VMEM even at tile_i=128), add a
    # streamed/online-softmax variant over D chunks (flash-softmax style).
    grid = (pl.cdiv(outer, tile_o), pl.cdiv(inner, tile_i))
    blk = (tile_o, d, tile_i)
    idx = lambda o, i: (o, 0, i)
    kernel = _real_softmax_kernel if len(planes) == 1 else _complex_softmax_kernel
    kernel = functools.partial(kernel, axis=-2)
    outs = pl.pallas_call(
        kernel,
        out_shape=tuple(jax.ShapeDtypeStruct((outer, d, inner), t) for t in out_dtypes),
        grid=grid,
        in_specs=[pl.BlockSpec(blk, idx) for _ in planes],
        out_specs=tuple(pl.BlockSpec(blk, idx) for _ in out_dtypes),
        compiler_params=pltpu.CompilerParams(
            dimension_semantics=("parallel", "parallel"),
            vmem_limit_bytes=_VMEM_LIMIT_BYTES),
    )(*planes)
    if not isinstance(outs, (tuple, list)):
        outs = (outs,)
    return tuple(outs)


def _run_softmax_lane(planes, out_dtypes):
    """planes: 1 or 2 arrays of shape (rows, D); softmax over the last (lane) axis."""
    rows, d = planes[0].shape
    item_sum = (sum(np.dtype(p.dtype).itemsize for p in planes)
                + sum(np.dtype(t).itemsize for t in out_dtypes))
    tile_r = _choose_lane_tile(rows, d, item_sum)
    grid = (pl.cdiv(rows, tile_r),)
    blk = (tile_r, d)
    idx = lambda r: (r, 0)
    kernel = _real_softmax_kernel if len(planes) == 1 else _complex_softmax_kernel
    kernel = functools.partial(kernel, axis=-1)
    outs = pl.pallas_call(
        kernel,
        out_shape=tuple(jax.ShapeDtypeStruct((rows, d), t) for t in out_dtypes),
        grid=grid,
        in_specs=[pl.BlockSpec(blk, idx) for _ in planes],
        out_specs=tuple(pl.BlockSpec(blk, idx) for _ in out_dtypes),
        compiler_params=pltpu.CompilerParams(
            dimension_semantics=("parallel",),
            vmem_limit_bytes=_VMEM_LIMIT_BYTES),
    )(*planes)
    if not isinstance(outs, (tuple, list)):
        outs = (outs,)
    return tuple(outs)


# ---------------------------------------------------------------------------
# Public wrapper (matches torchcomplex Softmax(dim).forward)
# ---------------------------------------------------------------------------

def complex_softmax(x, dim=None):
    """JAX/Pallas equivalent of torchcomplex Softmax(dim).forward(x)."""
    x = jnp.asarray(x)
    if dim is None:
        dim = 0 if x.ndim in (0, 1, 3) else 1
    if dim < 0:
        dim += x.ndim
    shape = x.shape
    d = shape[dim]
    outer = int(np.prod(shape[:dim], dtype=np.int64))
    inner = int(np.prod(shape[dim + 1:], dtype=np.int64))
    is_complex = jnp.iscomplexobj(x)

    if inner > 1:
        # Pure reshape (no transpose): softmax axis lands on sublanes, the
        # contiguous trailing axes land on lanes (lane-dense loads/stores).
        x3 = x.reshape(outer, d, inner)
        if is_complex:
            xr, xi = jnp.real(x3), jnp.imag(x3)
            o_r, o_i = _run_softmax_sublane((xr, xi), (xr.dtype, xi.dtype))
            out = lax.complex(o_r, o_i)
        else:
            (out,) = _run_softmax_sublane((x3,), (x3.dtype,))
    else:
        # Softmax over the last axis: (rows, D) with a lane reduction.
        x2 = x.reshape(outer, d)
        if is_complex:
            xr, xi = jnp.real(x2), jnp.imag(x2)
            o_r, o_i = _run_softmax_lane((xr, xi), (xr.dtype, xi.dtype))
            out = lax.complex(o_r, o_i)
        else:
            (out,) = _run_softmax_lane((x2,), (x2.dtype,))
    return out.reshape(shape)


if __name__ == "__main__":
    key = jax.random.PRNGKey(0)
    k1, k2, k3, k4 = jax.random.split(key, 4)

    # 1) Complex NCHW input, dim=None -> dim=1 (primary torchcomplex use case).
    B, C, H, W = 2, 4, 16, 16
    xr = jax.random.normal(k1, (B, C, H, W), dtype=jnp.float32)
    xi = jax.random.normal(k2, (B, C, H, W), dtype=jnp.float32)
    xc = lax.complex(xr, xi)
    out_c = jax.block_until_ready(complex_softmax(xc, dim=None))
    ref_c = lax.complex(jax.nn.softmax(xr, axis=1), jax.nn.softmax(xi, axis=1))
    np.testing.assert_allclose(np.asarray(out_c), np.asarray(ref_c), rtol=1e-5, atol=1e-5)

    # 2) Real input, same shape (exercises the single-plane fast path).
    out_r = jax.block_until_ready(complex_softmax(xr, dim=1))
    np.testing.assert_allclose(np.asarray(out_r),
                               np.asarray(jax.nn.softmax(xr, axis=1)),
                               rtol=1e-5, atol=1e-5)

    # 3) Real input, softmax over the last axis (lane-reduce path).
    y = jax.random.normal(k3, (2, 8, 32), dtype=jnp.float32)
    out_y = jax.block_until_ready(complex_softmax(y, dim=-1))
    np.testing.assert_allclose(np.asarray(out_y),
                               np.asarray(jax.nn.softmax(y, axis=-1)),
                               rtol=1e-5, atol=1e-5)

    # 4) Complex input, softmax over the last axis (complex lane-reduce path).
    zr = jax.random.normal(k4, (2, 4, 32), dtype=jnp.float32)
    zi = jax.random.normal(k1, (2, 4, 32), dtype=jnp.float32)
    z = lax.complex(zr, zi)
    out_z = jax.block_until_ready(complex_softmax(z, dim=-1))
    ref_z = lax.complex(jax.nn.softmax(zr, axis=-1), jax.nn.softmax(zi, axis=-1))
    np.testing.assert_allclose(np.asarray(out_z), np.asarray(ref_z), rtol=1e-5, atol=1e-5)

    print("KERNEL_OK")
</pallas_src>

<mosaic_0001>
module attributes {stable_mosaic.version = 11 : i64} {
  func.func @_complex_softmax_kernel(%arg0: i32, %arg1: i32, %arg2: memref<2x4x256xf32, #tpu.memory_space<vmem>>, %arg3: memref<2x4x256xf32, #tpu.memory_space<vmem>>, %arg4: memref<2x4x256xf32, #tpu.memory_space<vmem>>, %arg5: memref<2x4x256xf32, #tpu.memory_space<vmem>>) attributes {dimension_semantics = [#tpu.dimension_semantics<parallel>, #tpu.dimension_semantics<parallel>], iteration_bounds = array<i64: 1, 1>, scalar_prefetch = 0 : i64, scratch_operands = 0 : i64, tpu.core_type = #tpu.core_type<tc>, window_params = [{transform_indices = @transform_0, window_bounds = array<i64: 2, 4, 256>}, {transform_indices = @transform_1, window_bounds = array<i64: 2, 4, 256>}, {transform_indices = @transform_2, window_bounds = array<i64: 2, 4, 256>}, {transform_indices = @transform_3, window_bounds = array<i64: 2, 4, 256>}]} {
    %c0 = arith.constant 0 : index
    %c0_0 = arith.constant 0 : index
    %c0_1 = arith.constant 0 : index
    %0 = vector.load %arg2[%c0, %c0_0, %c0_1] : memref<2x4x256xf32, #tpu.memory_space<vmem>>, vector<2x4x256xf32>
    %cst = arith.constant dense<0xFF800000> : vector<2x256xf32>
    %1 = vector.multi_reduction <maximumf>, %0, %cst [1] : vector<2x4x256xf32> to vector<2x256xf32>
    %2 = vector.shape_cast %1 : vector<2x256xf32> to vector<2x1x256xf32>
    %3 = vector.broadcast %2 : vector<2x1x256xf32> to vector<2x4x256xf32>
    %4 = arith.subf %0, %3 : vector<2x4x256xf32>
    %5 = math.exp %4 : vector<2x4x256xf32>
    %cst_2 = arith.constant dense<0.000000e+00> : vector<2x256xf32>
    %6 = vector.multi_reduction <add>, %5, %cst_2 [1] : vector<2x4x256xf32> to vector<2x256xf32>
    %7 = vector.shape_cast %6 : vector<2x256xf32> to vector<2x1x256xf32>
    %8 = tpu.reciprocal %7 : vector<2x1x256xf32> -> vector<2x1x256xf32>
    %9 = vector.broadcast %8 : vector<2x1x256xf32> to vector<2x4x256xf32>
    %10 = arith.mulf %5, %9 : vector<2x4x256xf32>
    %c0_3 = arith.constant 0 : index
    %c0_4 = arith.constant 0 : index
    %c0_5 = arith.constant 0 : index
    %11 = vector.load %arg4[%c0_3, %c0_4, %c0_5] : memref<2x4x256xf32, #tpu.memory_space<vmem>>, vector<2x4x256xf32>
    tpu.vector_store %arg4[%c0_3, %c0_4, %c0_5], %10 {strides = array<i32>} : memref<2x4x256xf32, #tpu.memory_space<vmem>>, vector<2x4x256xf32>,
    %c0_6 = arith.constant 0 : index
    %c0_7 = arith.constant 0 : index
    %c0_8 = arith.constant 0 : index
    %12 = vector.load %arg3[%c0_6, %c0_7, %c0_8] : memref<2x4x256xf32, #tpu.memory_space<vmem>>, vector<2x4x256xf32>
    %cst_9 = arith.constant dense<0xFF800000> : vector<2x256xf32>
    %13 = vector.multi_reduction <maximumf>, %12, %cst_9 [1] : vector<2x4x256xf32> to vector<2x256xf32>
    %14 = vector.shape_cast %13 : vector<2x256xf32> to vector<2x1x256xf32>
    %15 = vector.broadcast %14 : vector<2x1x256xf32> to vector<2x4x256xf32>
    %16 = arith.subf %12, %15 : vector<2x4x256xf32>
    %17 = math.exp %16 : vector<2x4x256xf32>
    %cst_10 = arith.constant dense<0.000000e+00> : vector<2x256xf32>
    %18 = vector.multi_reduction <add>, %17, %cst_10 [1] : vector<2x4x256xf32> to vector<2x256xf32>
    %19 = vector.shape_cast %18 : vector<2x256xf32> to vector<2x1x256xf32>
    %20 = tpu.reciprocal %19 : vector<2x1x256xf32> -> vector<2x1x256xf32>
    %21 = vector.broadcast %20 : vector<2x1x256xf32> to vector<2x4x256xf32>
    %22 = arith.mulf %17, %21 : vector<2x4x256xf32>
    %c0_11 = arith.constant 0 : index
    %c0_12 = arith.constant 0 : index
    %c0_13 = arith.constant 0 : index
    %23 = vector.load %arg5[%c0_11, %c0_12, %c0_13] : memref<2x4x256xf32, #tpu.memory_space<vmem>>, vector<2x4x256xf32>
    tpu.vector_store %arg5[%c0_11, %c0_12, %c0_13], %22 {strides = array<i32>} : memref<2x4x256xf32, #tpu.memory_space<vmem>>, vector<2x4x256xf32>,
    return
  }
  func.func @transform_0(%arg0: i32, %arg1: i32) -> (i32, i32, i32) {
    %c0_i32 = arith.constant 0 : i32
    %c0_i32_0 = arith.constant 0 : i32
    return %arg0, %c0_i32, %arg1 : i32, i32, i32
  }
  func.func @transform_1(%arg0: i32, %arg1: i32) -> (i32, i32, i32) {
    %c0_i32 = arith.constant 0 : i32
    %c0_i32_0 = arith.constant 0 : i32
    return %arg0, %c0_i32, %arg1 : i32, i32, i32
  }
  func.func @transform_2(%arg0: i32, %arg1: i32) -> (i32, i32, i32) {
    %c0_i32 = arith.constant 0 : i32
    %c0_i32_0 = arith.constant 0 : i32
    return %arg0, %c0_i32, %arg1 : i32, i32, i32
  }
  func.func @transform_3(%arg0: i32, %arg1: i32) -> (i32, i32, i32) {
    %c0_i32 = arith.constant 0 : i32
    %c0_i32_0 = arith.constant 0 : i32
    return %arg0, %c0_i32, %arg1 : i32, i32, i32
  }
}

</mosaic_0001>

<llo_original>
// kernel: tpu_custom_call.1
$region0: #{tpu_custom_call.1}
  #allocation0 [shape = 'u32[]', space=smem, size = 0x4, offset = 0x4, fixed_abs, tag = 'smem constant byte address 0x4 - core index']
  #allocation1 [shape = 'u32[144,128]{1,0:T(1,128)}', space=vmem, size = 0x12000, scoped, tag = 'internal scratch']
  %s0 = inlined_call_operand.hbm [shape: f32[2,4,256], index: 0, kind: input, shape index: {}]
  %s1 = inlined_call_operand.hbm [shape: f32[2,4,256], index: 1, kind: input, shape index: {}]
  %s2 = inlined_call_operand.hbm [shape: f32[2,4,256], index: 2, kind: output, shape index: {0}]
  %s3 = inlined_call_operand.hbm [shape: f32[2,4,256], index: 3, kind: output, shape index: {1}]
  %4 = xla_tuple %s2, %s3
  %s5 = sld [smem:[#allocation0]]
  $region34: #{tpu_custom_call.1} parent=0
    _
  %s7 = ssub.s32 1, %s5
  %s8 = scalar_select 0, %s7, %s5
  $region1: #{tpu_custom_call.1} parent=0
    #allocation2 [shape = 'u8[8192]{0}', space=vmem, size = 0x2000, scoped, tag = 'input window, operand 0, single buffered']
    #allocation3 [shape = 's32[1]{0}', space=sflag, size = 0x4, scoped, tag = 'scoped memory for tpu_custom_call.1']
    #allocation4 [shape = 's32[1]{0}', space=sflag, size = 0x4, scoped, tag = 'scoped memory for tpu_custom_call.1']
    #allocation5 [shape = 'u8[8192]{0}', space=vmem, size = 0x2000, scoped, tag = 'input window, operand 1, single buffered']
    #allocation6 [shape = 's32[1]{0}', space=sflag, size = 0x4, scoped, tag = 'scoped memory for tpu_custom_call.1']
    #allocation7 [shape = 'u8[8192]{0}', space=vmem, size = 0x2000, scoped, tag = 'output window, operand 0, single buffered']
    #allocation8 [shape = 'u8[8192]{0}', space=vmem, size = 0x2000, scoped, tag = 'output window, operand 1, single buffered']
    #allocation9 [shape = 's32[1]{0}', space=sflag, size = 0x4, scoped, tag = 'scoped memory for tpu_custom_call.1']
    %9 = vsyncpa [#allocation3], 0
    %10 = vsyncpa [#allocation6], 0
    %11 = vsyncpa [#allocation4], 0
    %12 = vsyncpa [#allocation9], 0
    // Predicated region
    $region2: #{tpu_custom_call.1} parent=1 // pred_check
      _
    $region3: #{tpu_custom_call.1} parent=1 // pred_check_branch
      %14 = sbr.rel (0) target = $region5
    $region4: #{tpu_custom_call.1} parent=1 // pred_region
      %s16 = ssub.s32 256, 256
      %17 = vsyncadd [#allocation3], %s16
      %s18 = sshll.u32 [#allocation2], 4
      %s19 = int_to_ptr.vmem [resolvable:$true] %s18
      %24 = dma.hbm_to_vmem [thread:$0]  %s0, 256, %s19, [#allocation3], 128, 128, 8
    $region5: #{tpu_custom_call.1} parent=1 // pred_fallthru
      _
    // Predicated region
    $region6: #{tpu_custom_call.1} parent=1 // pred_check
      _
    $region7: #{tpu_custom_call.1} parent=1 // pred_check_branch
      %26 = sbr.rel (0) target = $region9
    $region8: #{tpu_custom_call.1} parent=1 // pred_region
      %s28 = ssub.s32 256, 256
      %29 = vsyncadd [#allocation6], %s28
      %s30 = sshll.u32 [#allocation5], 4
      %s31 = int_to_ptr.vmem [resolvable:$true] %s30
      %36 = dma.hbm_to_vmem [thread:$0]  %s1, 256, %s31, [#allocation6], 128, 128, 8
    $region9: #{tpu_custom_call.1} parent=1 // pred_fallthru
      _
    // Predicated region
    $region10: #{tpu_custom_call.1} parent=1 // pred_check
      _
    $region11: #{tpu_custom_call.1} parent=1 // pred_check_branch
      %38 = sbr.rel (0) target = $region13
    $region12: #{tpu_custom_call.1} parent=1 // pred_region
      %39 = dma.done [#allocation3], 256
    $region13: #{tpu_custom_call.1} parent=1 // pred_fallthru
      _
    // Predicated region
    $region14: #{tpu_custom_call.1} parent=1 // pred_check
      _
    $region15: #{tpu_custom_call.1} parent=1 // pred_check_branch
      %41 = sbr.rel (0) target = $region17
    $region16: #{tpu_custom_call.1} parent=1 // pred_region
      %42 = dma.done [#allocation6], 256
    $region17: #{tpu_custom_call.1} parent=1 // pred_fallthru
      _
    %v43 = vld [vmem:[#allocation2] sm:$0xff]
    %v44 = vld [vmem:[#allocation2 + $0x8] sm:$0xff]
    %v47 = vcombine.high %v43, %v43
    %v48 = vcombine.high %v44, %v44
    %vm51 = vcmask 1043456
    %v52 = vsel %vm51, %v43, -inf
    %v53 = vrot.slane %v52, 4
    %v54 = vmax.f32 %v52, %v53
    %v55 = vrot.slane %v54, 2
    %v56 = vmax.f32 %v54, %v55
    %v57 = vrot.slane %v56, 1
    %v58 = vmax.f32 %v56, %v57
    %v59 = vsel %vm51, %v47, -inf
    %v60 = vrot.slane %v59, 4
    %v61 = vmax.f32 %v59, %v60
    %v62 = vrot.slane %v61, 2
    %v63 = vmax.f32 %v61, %v62
    %v64 = vrot.slane %v63, 1
    %v65 = vmax.f32 %v63, %v64
    %v66 = vsel %vm51, %v44, -inf
    %v67 = vrot.slane %v66, 4
    %v68 = vmax.f32 %v66, %v67
    %v69 = vrot.slane %v68, 2
    %v70 = vmax.f32 %v68, %v69
    %v71 = vrot.slane %v70, 1
    %v72 = vmax.f32 %v70, %v71
    %v73 = vsel %vm51, %v48, -inf
    %v74 = vrot.slane %v73, 4
    %v75 = vmax.f32 %v73, %v74
    %v76 = vrot.slane %v75, 2
    %v77 = vmax.f32 %v75, %v76
    %v78 = vrot.slane %v77, 1
    %v79 = vmax.f32 %v77, %v78
    %v84 = vcombine.low %v58, %v65
    %v85 = vcombine.low %v72, %v79
    %v88 = vsub.f32 %v43, %v84
    %v89 = vsub.f32 %v44, %v85
    %v90 = vmul.f32 %v88, 1.442695
    %v91 = vpow.pop %v90
    %v92 = vmul.f32 %v89, 1.442695
    %v93 = vpow.pop %v92
    %v96 = vcombine.high %v91, %v91
    %v97 = vcombine.high %v93, %v93
    %v100 = vsel %vm51, %v91, 0.0
    %v101 = vrot.slane %v100, 4
    %v102 = vadd.f32 %v100, %v101
    %v103 = vrot.slane %v102, 2
    %v104 = vadd.f32 %v102, %v103
    %v105 = vrot.slane %v104, 1
    %v106 = vadd.f32 %v104, %v105
    %v107 = vsel %vm51, %v96, 0.0
    %v108 = vrot.slane %v107, 4
    %v109 = vadd.f32 %v107, %v108
    %v110 = vrot.slane %v109, 2
    %v111 = vadd.f32 %v109, %v110
    %v112 = vrot.slane %v111, 1
    %v113 = vadd.f32 %v111, %v112
    %v114 = vsel %vm51, %v93, 0.0
    %v115 = vrot.slane %v114, 4
    %v116 = vadd.f32 %v114, %v115
    %v117 = vrot.slane %v116, 2
    %v118 = vadd.f32 %v116, %v117
    %v119 = vrot.slane %v118, 1
    %v120 = vadd.f32 %v118, %v119
    %v121 = vsel %vm51, %v97, 0.0
    %v122 = vrot.slane %v121, 4
    %v123 = vadd.f32 %v121, %v122
    %v124 = vrot.slane %v123, 2
    %v125 = vadd.f32 %v123, %v124
    %v126 = vrot.slane %v125, 1
    %v127 = vadd.f32 %v125, %v126
    %v128 = vrcp.pop %v106
    %v129 = vrcp.pop %v113
    %v130 = vrcp.pop %v120
    %v131 = vrcp.pop %v127
    %v136 = vcombine.low %v128, %v129
    %v137 = vcombine.low %v130, %v131
    %v140 = vmul.f32 %v91, %v136
    %v141 = vmul.f32 %v93, %v137
    %142 = vst [vmem:[#allocation7] sm:$0xff] %v140
    %143 = vst [vmem:[#allocation7 + $0x8] sm:$0xff] %v141
    %v144 = vld [vmem:[#allocation5] sm:$0xff]
    %v145 = vld [vmem:[#allocation5 + $0x8] sm:$0xff]
    %v148 = vcombine.high %v144, %v144
    %v149 = vcombine.high %v145, %v145
    %v152 = vsel %vm51, %v144, -inf
    %v153 = vrot.slane %v152, 4
    %v154 = vmax.f32 %v152, %v153
    %v155 = vrot.slane %v154, 2
    %v156 = vmax.f32 %v154, %v155
    %v157 = vrot.slane %v156, 1
    %v158 = vmax.f32 %v156, %v157
    %v159 = vsel %vm51, %v148, -inf
    %v160 = vrot.slane %v159, 4
    %v161 = vmax.f32 %v159, %v160
    %v162 = vrot.slane %v161, 2
    %v163 = vmax.f32 %v161, %v162
    %v164 = vrot.slane %v163, 1
    %v165 = vmax.f32 %v163, %v164
    %v166 = vsel %vm51, %v145, -inf
    %v167 = vrot.slane %v166, 4
    %v168 = vmax.f32 %v166, %v167
    %v169 = vrot.slane %v168, 2
    %v170 = vmax.f32 %v168, %v169
    %v171 = vrot.slane %v170, 1
    %v172 = vmax.f32 %v170, %v171
    %v173 = vsel %vm51, %v149, -inf
    %v174 = vrot.slane %v173, 4
    %v175 = vmax.f32 %v173, %v174
    %v176 = vrot.slane %v175, 2
    %v177 = vmax.f32 %v175, %v176
    %v178 = vrot.slane %v177, 1
    %v179 = vmax.f32 %v177, %v178
    %v184 = vcombine.low %v158, %v165
    %v185 = vcombine.low %v172, %v179
    %v188 = vsub.f32 %v144, %v184
    %v189 = vsub.f32 %v145, %v185
    %v190 = vmul.f32 %v188, 1.442695
    %v191 = vpow.pop %v190
    %v192 = vmul.f32 %v189, 1.442695
    %v193 = vpow.pop %v192
    %v196 = vcombine.high %v191, %v191
    %v197 = vcombine.high %v193, %v193
    %v200 = vsel %vm51, %v191, 0.0
    %v201 = vrot.slane %v200, 4
    %v202 = vadd.f32 %v200, %v201
    %v203 = vrot.slane %v202, 2
    %v204 = vadd.f32 %v202, %v203
    %v205 = vrot.slane %v204, 1
    %v206 = vadd.f32 %v204, %v205
    %v207 = vsel %vm51, %v196, 0.0
    %v208 = vrot.slane %v207, 4
    %v209 = vadd.f32 %v207, %v208
    %v210 = vrot.slane %v209, 2
    %v211 = vadd.f32 %v209, %v210
    %v212 = vrot.slane %v211, 1
    %v213 = vadd.f32 %v211, %v212
    %v214 = vsel %vm51, %v193, 0.0
    %v215 = vrot.slane %v214, 4
    %v216 = vadd.f32 %v214, %v215
    %v217 = vrot.slane %v216, 2
    %v218 = vadd.f32 %v216, %v217
    %v219 = vrot.slane %v218, 1
    %v220 = vadd.f32 %v218, %v219
    %v221 = vsel %vm51, %v197, 0.0
    %v222 = vrot.slane %v221, 4
    %v223 = vadd.f32 %v221, %v222
    %v224 = vrot.slane %v223, 2
    %v225 = vadd.f32 %v223, %v224
    %v226 = vrot.slane %v225, 1
    %v227 = vadd.f32 %v225, %v226
    %v228 = vrcp.pop %v206
    %v229 = vrcp.pop %v213
    %v230 = vrcp.pop %v220
    %v231 = vrcp.pop %v227
    %v236 = vcombine.low %v228, %v229
    %v237 = vcombine.low %v230, %v231
    %v240 = vmul.f32 %v191, %v236
    %v241 = vmul.f32 %v193, %v237
    %242 = vst [vmem:[#allocation8] sm:$0xff] %v240
    %243 = vst [vmem:[#allocation8 + $0x8] sm:$0xff] %v241
    // Predicated region
    $region18: #{tpu_custom_call.1} parent=1 // pred_check
      _
    $region19: #{tpu_custom_call.1} parent=1 // pred_check_branch
      %245 = sbr.rel (0) target = $region21
    $region20: #{tpu_custom_call.1} parent=1 // pred_region
      %s247 = ssub.s32 256, 256
      %248 = vsyncadd [#allocation4], %s247
      %s249 = sshll.u32 [#allocation7], 4
      %s250 = int_to_ptr.vmem [resolvable:$true] %s249
      %255 = dma.vmem_to_hbm [thread:$0]  %s250, 256, %s2, [#allocation4], 128, 128, 8
    $region21: #{tpu_custom_call.1} parent=1 // pred_fallthru
      _
    // Predicated region
    $region22: #{tpu_custom_call.1} parent=1 // pred_check
      _
    $region23: #{tpu_custom_call.1} parent=1 // pred_check_branch
      %257 = sbr.rel (0) target = $region25
    $region24: #{tpu_custom_call.1} parent=1 // pred_region
      %s259 = ssub.s32 256, 256
      %260 = vsyncadd [#allocation9], %s259
      %s261 = sshll.u32 [#allocation8], 4
      %s262 = int_to_ptr.vmem [resolvable:$true] %s261
      %267 = dma.vmem_to_hbm [thread:$0]  %s262, 256, %s3, [#allocation9], 128, 128, 8
    $region25: #{tpu_custom_call.1} parent=1 // pred_fallthru
      _
    // Predicated region
    $region26: #{tpu_custom_call.1} parent=1 // pred_check
      _
    $region27: #{tpu_custom_call.1} parent=1 // pred_check_branch
      %269 = sbr.rel (0) target = $region29
    $region28: #{tpu_custom_call.1} parent=1 // pred_region
      %270 = dma.done [#allocation4], 256
    $region29: #{tpu_custom_call.1} parent=1 // pred_fallthru
      _
    // Predicated region
    $region30: #{tpu_custom_call.1} parent=1 // pred_check
      _
    $region31: #{tpu_custom_call.1} parent=1 // pred_check_branch
      %272 = sbr.rel (0) target = $region33
    $region32: #{tpu_custom_call.1} parent=1 // pred_region
      %273 = dma.done [#allocation9], 256
    $region33: #{tpu_custom_call.1} parent=1 // pred_fallthru
      _
    %274 = vsyncpa [#allocation3], 1
    %275 = vsyncpa [#allocation6], 1
    %276 = vsyncpa [#allocation4], 1
    %277 = vsyncpa [#allocation9], 1

</llo_original>
